<compile_context>
chip_gen: v5e
topology: v5e:2x2
jax: 0.10.0
libtpu: 0.0.40
codegen_flags: <defaults>
</compile_context>

<pallas_src>
import jax
import jax.numpy as jnp
from jax import lax
from jax.experimental import pallas as pl
from jax.experimental.pallas import tpu as pltpu


def _q_mlp_kernel(feat_ref, act_ref, w1f_ref, w1a_ref, b1_ref,
                  w2_ref, b2_ref, w3_ref, b3_ref, out_ref):
    """One batch tile of the 3-layer Q MLP.  Output written lane-dense (1, TB)."""
    # Layer 1: split matmul replaces concat([feat, act]) @ W1.
    h = jnp.dot(feat_ref[...], w1f_ref[...], preferred_element_type=jnp.float32)
    h = h + jnp.dot(act_ref[...], w1a_ref[...], preferred_element_type=jnp.float32)
    h = jnp.maximum(h + b1_ref[...], 0.0)                        # f32 [TB, H1]

    # Layer 2.
    h = jnp.dot(h.astype(jnp.bfloat16), w2_ref[...],
                preferred_element_type=jnp.float32)
    h = jnp.maximum(h + b2_ref[...], 0.0)                        # f32 [TB, H2]

    # Layer 3 fused into the transposed, lane-dense write:
    #   q[1, TB] = w3_row[1, H2] . h[TB, H2]^T   (NT contraction over H2)
    q = lax.dot_general(w3_ref[...], h.astype(jnp.bfloat16),
                        (((1,), (1,)), ((), ())),
                        preferred_element_type=jnp.float32)       # [1, TB]
    out_ref[...] = q + b3_ref[...]


def q_mlp_pallas(feat, act, w1f, w1a, b1, w2, b2, w3, b3, *, block_b=1024):
    """feat: [B, F] bf16, act: [B, A] bf16.  Returns q: [B] f32."""
    B, F = feat.shape
    A = act.shape[1]
    H1 = w1f.shape[1]
    H2 = w2.shape[1]

    # Batch tile: whole batch if small, otherwise a multiple-of-128 tile so the
    # lane-dense (1, TB) output block satisfies the (8, 128) constraint.
    TB = B if B <= block_b else block_b
    grid = (pl.cdiv(B, TB),)

    def const_spec(shape):
        return pl.BlockSpec(shape, lambda i: (0, 0))

    in_specs = [
        pl.BlockSpec((TB, F), lambda i: (i, 0)),   # feat   (streamed, pipelined)
        pl.BlockSpec((TB, A), lambda i: (i, 0)),   # act    (streamed, pipelined)
        const_spec((F, H1)),                        # w1_feat (VMEM resident)
        const_spec((A, H1)),                        # w1_act
        const_spec((1, H1)),                        # b1
        const_spec((H1, H2)),                       # w2
        const_spec((1, H2)),                        # b2
        const_spec((1, H2)),                        # w3 row
        const_spec((1, 1)),                         # b3
    ]
    out_spec = pl.BlockSpec((1, TB), lambda i: (0, i))

    flops = 2 * B * (F * H1 + A * H1 + H1 * H2 + H2)
    bytes_accessed = int(
        feat.size * feat.dtype.itemsize + act.size * act.dtype.itemsize
        + sum(p.size * p.dtype.itemsize for p in (w1f, w1a, b1, w2, b2, w3, b3))
        + B * 4)

    out = pl.pallas_call(
        _q_mlp_kernel,
        out_shape=jax.ShapeDtypeStruct((1, B), jnp.float32),
        grid=grid,
        in_specs=in_specs,
        out_specs=out_spec,
        compiler_params=pltpu.CompilerParams(dimension_semantics=("parallel",)),
        cost_estimate=pl.CostEstimate(flops=flops, transcendentals=0,
                                      bytes_accessed=bytes_accessed),
    )(feat, act, w1f, w1a, b1, w2, b2, w3, b3)
    return out[0]                                   # [B]


class MLPQFunctionPallas:
    """feng='mlp' variant of MLPQFunction with deterministic init."""

    def __init__(self, obs_dim, act_dim, hidden_sizes, key):
        feat_dim = 1
        for d in obs_dim:
            feat_dim *= int(d)
        h1, h2 = int(hidden_sizes[0]), int(hidden_sizes[1])
        sizes = [feat_dim + act_dim, h1, h2, 1]

        raw = []
        for j in range(len(sizes) - 1):
            fan_in, fan_out = sizes[j], sizes[j + 1]
            key, kw, kb = jax.random.split(key, 3)
            bound = 1.0 / float(fan_in) ** 0.5
            # PyTorch Linear stores (out, in); we keep (in, out) so y = x @ W + b.
            w = jax.random.uniform(kw, (fan_in, fan_out), jnp.float32, -bound, bound)
            b = jax.random.uniform(kb, (1, fan_out), jnp.float32, -bound, bound)
            raw += [w, b]
        w1, b1, w2, b2, w3, b3 = raw
        self.f32_params = (w1, b1, w2, b2, w3, b3)   # exact PyTorch-layout params

        # Kernel-layout params: split w1 (kills the concat), zero-pad hidden
        # widths to multiples of 128 (lane-dense tiles), store w3 as a row
        # vector, weights in bf16 (biases stay f32).
        H1 = max(128, -(-h1 // 128) * 128)
        H2 = max(128, -(-h2 // 128) * 128)
        w1f = jnp.pad(w1[:feat_dim], ((0, 0), (0, H1 - h1)))
        w1a = jnp.pad(w1[feat_dim:], ((0, 0), (0, H1 - h1)))
        b1p = jnp.pad(b1, ((0, 0), (0, H1 - h1)))
        w2p = jnp.pad(w2, ((0, H1 - h1), (0, H2 - h2)))
        b2p = jnp.pad(b2, ((0, 0), (0, H2 - h2)))
        w3r = jnp.pad(w3.T, ((0, 0), (0, H2 - h2)))                 # [1, H2]
        self.kernel_params = (
            w1f.astype(jnp.bfloat16), w1a.astype(jnp.bfloat16), b1p,
            w2p.astype(jnp.bfloat16), b2p,
            w3r.astype(jnp.bfloat16), b3,
        )
        self.act_dim = act_dim

    def __call__(self, obs, act):
        B = obs.shape[0]
        feat = obs.reshape(B, -1).astype(jnp.bfloat16)   # Flatten (fe_net)
        act_b = act.astype(jnp.bfloat16)
        return q_mlp_pallas(feat, act_b, *self.kernel_params)       # [B]


def _reference_bf16(obs, act, kparams):
    """Pure-JAX mirror of the kernel math (bf16 MXU inputs, f32 accumulation)."""
    w1f, w1a, b1, w2, b2, w3, b3 = kparams
    B = obs.shape[0]
    feat = obs.reshape(B, -1).astype(jnp.bfloat16)
    a = act.astype(jnp.bfloat16)
    h = (jnp.dot(feat, w1f, preferred_element_type=jnp.float32)
         + jnp.dot(a, w1a, preferred_element_type=jnp.float32))
    h = jnp.maximum(h + b1, 0.0)
    h = jnp.dot(h.astype(jnp.bfloat16), w2, preferred_element_type=jnp.float32)
    h = jnp.maximum(h + b2, 0.0)
    q = jnp.dot(h.astype(jnp.bfloat16), w3.T, preferred_element_type=jnp.float32) + b3
    return q[:, 0]


def _reference_f32(obs, act, params):
    """Exact PyTorch forward semantics in f32 (unsplit/unpadded params)."""
    w1, b1, w2, b2, w3, b3 = params
    B = obs.shape[0]
    x = jnp.concatenate([obs.reshape(B, -1), act], axis=-1)
    h = jnp.maximum(x @ w1 + b1, 0.0)
    h = jnp.maximum(h @ w2 + b2, 0.0)
    return jnp.squeeze(h @ w3 + b3, -1)


if __name__ == "__main__":
    key = jax.random.PRNGKey(0)
    k_obs, k_act, k_init = jax.random.split(key, 3)

    # Small shapes consistent with the module: obs is an image-like NCHW tensor,
    # act is a flat action vector.
    B = 2
    obs_dim = (4, 16, 16)       # C, H, W  -> feat_dim = 1024
    act_dim = 8
    hidden_sizes = (32, 32)

    obs = jax.random.normal(k_obs, (B,) + obs_dim, jnp.float32)
    act = jax.random.normal(k_act, (B, act_dim), jnp.float32)

    qf = MLPQFunctionPallas(obs_dim, act_dim, hidden_sizes, k_init)

    q = jax.block_until_ready(qf(obs, act))
    assert q.shape == (B,), q.shape

    # Kernel vs. identical-dtype pure-JAX math: tight tolerance.
    q_ref = _reference_bf16(obs, act, qf.kernel_params)
    assert jnp.allclose(q, q_ref, atol=1e-3, rtol=1e-3), (q, q_ref)

    # Kernel vs. exact f32 PyTorch semantics: loose tolerance (bf16 inputs).
    q_f32 = _reference_f32(obs, act, qf.f32_params)
    assert jnp.allclose(q, q_f32, atol=1e-1, rtol=1e-1), (q, q_f32)

    # TODO(synk): the feng='cnn' branch (Conv2d x3 + AdaptiveAvgPool2d) is not
    # implemented here; only the feng='mlp' Flatten feature extractor is used.
    print("KERNEL_OK")
</pallas_src>

<mosaic_0001>
module attributes {stable_mosaic.version = 11 : i64} {
  func.func @_q_mlp_kernel(%arg0: i32, %arg1: memref<2x1024xbf16, #tpu.memory_space<vmem>>, %arg2: memref<2x8xbf16, #tpu.memory_space<vmem>>, %arg3: memref<1024x128xbf16, #tpu.memory_space<vmem>>, %arg4: memref<8x128xbf16, #tpu.memory_space<vmem>>, %arg5: memref<1x128xf32, #tpu.memory_space<vmem>>, %arg6: memref<128x128xbf16, #tpu.memory_space<vmem>>, %arg7: memref<1x128xf32, #tpu.memory_space<vmem>>, %arg8: memref<1x128xbf16, #tpu.memory_space<vmem>>, %arg9: memref<1x1xf32, #tpu.memory_space<vmem>>, %arg10: memref<1x2xf32, #tpu.memory_space<vmem>>) attributes {dimension_semantics = [#tpu.dimension_semantics<parallel>], iteration_bounds = array<i64: 1>, scalar_prefetch = 0 : i64, scratch_operands = 0 : i64, tpu.core_type = #tpu.core_type<tc>, window_params = [{transform_indices = @transform_0, window_bounds = array<i64: 2, 1024>}, {transform_indices = @transform_1, window_bounds = array<i64: 2, 8>}, {pipeline_mode = #tpu.pipeline_mode<synchronous>, transform_indices = @transform_2, window_bounds = array<i64: 1024, 128>}, {pipeline_mode = #tpu.pipeline_mode<synchronous>, transform_indices = @transform_3, window_bounds = array<i64: 8, 128>}, {pipeline_mode = #tpu.pipeline_mode<synchronous>, transform_indices = @transform_4, window_bounds = array<i64: 1, 128>}, {pipeline_mode = #tpu.pipeline_mode<synchronous>, transform_indices = @transform_5, window_bounds = array<i64: 128, 128>}, {pipeline_mode = #tpu.pipeline_mode<synchronous>, transform_indices = @transform_6, window_bounds = array<i64: 1, 128>}, {pipeline_mode = #tpu.pipeline_mode<synchronous>, transform_indices = @transform_7, window_bounds = array<i64: 1, 128>}, {pipeline_mode = #tpu.pipeline_mode<synchronous>, transform_indices = @transform_8, window_bounds = array<i64: 1, 1>}, {transform_indices = @transform_9, window_bounds = array<i64: 1, 2>}]} {
    %c0 = arith.constant 0 : index
    %c0_0 = arith.constant 0 : index
    %0 = vector.load %arg1[%c0, %c0_0] : memref<2x1024xbf16, #tpu.memory_space<vmem>>, vector<2x1024xbf16>
    %c0_1 = arith.constant 0 : index
    %c0_2 = arith.constant 0 : index
    %1 = vector.load %arg3[%c0_1, %c0_2] : memref<1024x128xbf16, #tpu.memory_space<vmem>>, vector<1024x128xbf16>
    %cst = arith.constant dense<0.000000e+00> : vector<2x128xf32>
    %2 = tpu.matmul %0, %1, %cst {dimension_numbers = #tpu.dot_dimension_numbers<[1], [0], [0], [1], [0, 0, 1, 1], [], []>} : vector<2x1024xbf16>, vector<1024x128xbf16>, vector<2x128xf32> -> vector<2x128xf32>
    %c0_3 = arith.constant 0 : index
    %c0_4 = arith.constant 0 : index
    %3 = vector.load %arg2[%c0_3, %c0_4] : memref<2x8xbf16, #tpu.memory_space<vmem>>, vector<2x8xbf16>
    %c0_5 = arith.constant 0 : index
    %c0_6 = arith.constant 0 : index
    %4 = vector.load %arg4[%c0_5, %c0_6] : memref<8x128xbf16, #tpu.memory_space<vmem>>, vector<8x128xbf16>
    %cst_7 = arith.constant dense<0.000000e+00> : vector<2x128xf32>
    %5 = tpu.matmul %3, %4, %cst_7 {dimension_numbers = #tpu.dot_dimension_numbers<[1], [0], [0], [1], [0, 0, 1, 1], [], []>} : vector<2x8xbf16>, vector<8x128xbf16>, vector<2x128xf32> -> vector<2x128xf32>
    %6 = arith.addf %2, %5 : vector<2x128xf32>
    %c0_8 = arith.constant 0 : index
    %c0_9 = arith.constant 0 : index
    %7 = vector.load %arg5[%c0_8, %c0_9] : memref<1x128xf32, #tpu.memory_space<vmem>>, vector<1x128xf32>
    %8 = vector.broadcast %7 : vector<1x128xf32> to vector<2x128xf32>
    %9 = arith.addf %6, %8 : vector<2x128xf32>
    %cst_10 = arith.constant 0.000000e+00 : f32
    %10 = vector.broadcast %cst_10 : f32 to vector<2x128xf32>
    %11 = arith.maximumf %9, %10 : vector<2x128xf32>
    %12 = arith.truncf %11 : vector<2x128xf32> to vector<2x128xbf16>
    %c0_11 = arith.constant 0 : index
    %c0_12 = arith.constant 0 : index
    %13 = vector.load %arg6[%c0_11, %c0_12] : memref<128x128xbf16, #tpu.memory_space<vmem>>, vector<128x128xbf16>
    %cst_13 = arith.constant dense<0.000000e+00> : vector<2x128xf32>
    %14 = tpu.matmul %12, %13, %cst_13 {dimension_numbers = #tpu.dot_dimension_numbers<[1], [0], [0], [1], [0, 0, 1, 1], [], []>} : vector<2x128xbf16>, vector<128x128xbf16>, vector<2x128xf32> -> vector<2x128xf32>
    %c0_14 = arith.constant 0 : index
    %c0_15 = arith.constant 0 : index
    %15 = vector.load %arg7[%c0_14, %c0_15] : memref<1x128xf32, #tpu.memory_space<vmem>>, vector<1x128xf32>
    %16 = vector.broadcast %15 : vector<1x128xf32> to vector<2x128xf32>
    %17 = arith.addf %14, %16 : vector<2x128xf32>
    %cst_16 = arith.constant 0.000000e+00 : f32
    %18 = vector.broadcast %cst_16 : f32 to vector<2x128xf32>
    %19 = arith.maximumf %17, %18 : vector<2x128xf32>
    %c0_17 = arith.constant 0 : index
    %c0_18 = arith.constant 0 : index
    %20 = vector.load %arg8[%c0_17, %c0_18] : memref<1x128xbf16, #tpu.memory_space<vmem>>, vector<1x128xbf16>
    %21 = arith.truncf %19 : vector<2x128xf32> to vector<2x128xbf16>
    %cst_19 = arith.constant dense<0.000000e+00> : vector<1x2xf32>
    %22 = tpu.matmul %20, %21, %cst_19 {dimension_numbers = #tpu.dot_dimension_numbers<[1], [1], [0], [0], [0, 0, 1, 0], [], []>} : vector<1x128xbf16>, vector<2x128xbf16>, vector<1x2xf32> -> vector<1x2xf32>
    %c0_20 = arith.constant 0 : index
    %c0_21 = arith.constant 0 : index
    %23 = vector.load %arg9[%c0_20, %c0_21] : memref<1x1xf32, #tpu.memory_space<vmem>>, vector<1x1xf32>
    %24 = vector.broadcast %23 : vector<1x1xf32> to vector<1x2xf32>
    %25 = arith.addf %22, %24 : vector<1x2xf32>
    %c0_22 = arith.constant 0 : index
    %c0_23 = arith.constant 0 : index
    %26 = vector.load %arg10[%c0_22, %c0_23] : memref<1x2xf32, #tpu.memory_space<vmem>>, vector<1x2xf32>
    tpu.vector_store %arg10[%c0_22, %c0_23], %25 {strides = array<i32>} : memref<1x2xf32, #tpu.memory_space<vmem>>, vector<1x2xf32>,
    return
  }
  func.func @transform_0(%arg0: i32) -> (i32, i32) {
    %c0_i32 = arith.constant 0 : i32
    %c0_i32_0 = arith.constant 0 : i32
    return %arg0, %c0_i32 : i32, i32
  }
  func.func @transform_1(%arg0: i32) -> (i32, i32) {
    %c0_i32 = arith.constant 0 : i32
    %c0_i32_0 = arith.constant 0 : i32
    return %arg0, %c0_i32 : i32, i32
  }
  func.func @transform_2(%arg0: i32) -> (i32, i32) {
    %c0_i32 = arith.constant 0 : i32
    %c0_i32_0 = arith.constant 0 : i32
    %c0_i32_1 = arith.constant 0 : i32
    return %c0_i32, %c0_i32_0 : i32, i32
  }
  func.func @transform_3(%arg0: i32) -> (i32, i32) {
    %c0_i32 = arith.constant 0 : i32
    %c0_i32_0 = arith.constant 0 : i32
    %c0_i32_1 = arith.constant 0 : i32
    return %c0_i32, %c0_i32_0 : i32, i32
  }
  func.func @transform_4(%arg0: i32) -> (i32, i32) {
    %c0_i32 = arith.constant 0 : i32
    %c0_i32_0 = arith.constant 0 : i32
    %c0_i32_1 = arith.constant 0 : i32
    return %c0_i32, %c0_i32_0 : i32, i32
  }
  func.func @transform_5(%arg0: i32) -> (i32, i32) {
    %c0_i32 = arith.constant 0 : i32
    %c0_i32_0 = arith.constant 0 : i32
    %c0_i32_1 = arith.constant 0 : i32
    return %c0_i32, %c0_i32_0 : i32, i32
  }
  func.func @transform_6(%arg0: i32) -> (i32, i32) {
    %c0_i32 = arith.constant 0 : i32
    %c0_i32_0 = arith.constant 0 : i32
    %c0_i32_1 = arith.constant 0 : i32
    return %c0_i32, %c0_i32_0 : i32, i32
  }
  func.func @transform_7(%arg0: i32) -> (i32, i32) {
    %c0_i32 = arith.constant 0 : i32
    %c0_i32_0 = arith.constant 0 : i32
    %c0_i32_1 = arith.constant 0 : i32
    return %c0_i32, %c0_i32_0 : i32, i32
  }
  func.func @transform_8(%arg0: i32) -> (i32, i32) {
    %c0_i32 = arith.constant 0 : i32
    %c0_i32_0 = arith.constant 0 : i32
    %c0_i32_1 = arith.constant 0 : i32
    return %c0_i32, %c0_i32_0 : i32, i32
  }
  func.func @transform_9(%arg0: i32) -> (i32, i32) {
    %c0_i32 = arith.constant 0 : i32
    %c0_i32_0 = arith.constant 0 : i32
    return %c0_i32, %arg0 : i32, i32
  }
}

</mosaic_0001>

<llo_original>
// kernel: tpu_custom_call.1
$region0: #{tpu_custom_call.1}
  #allocation0 [shape = 'u32[]', space=smem, size = 0x4, offset = 0x4, fixed_abs, tag = 'smem constant byte address 0x4 - core index']
  #allocation1 [shape = 'u32[72,128]{1,0:T(1,128)}', space=vmem, size = 0x9000, scoped, tag = 'internal scratch']
  #allocation2 [shape = 'f32[1,1]{1,0:T(1,128)S(1)}', space=vmem, size = 0x200, scoped, tag = 'scoped memory for tpu_custom_call.1']
  %s0 = inlined_call_operand.hbm [shape: bf16[2,1024], index: 0, kind: input, shape index: {}]
  %s1 = inlined_call_operand.hbm [shape: bf16[2,8], index: 1, kind: input, shape index: {}]
  %s2 = inlined_call_operand.hbm [shape: bf16[1024,128], index: 2, kind: input, shape index: {}]
  %s3 = inlined_call_operand.vmem [shape: bf16[8,128], index: 3, kind: input, shape index: {}]
  %s4 = inlined_call_operand.vmem [shape: f32[1,128], index: 4, kind: input, shape index: {}]
  %s5 = inlined_call_operand.hbm [shape: bf16[128,128], index: 5, kind: input, shape index: {}]
  %s6 = inlined_call_operand.vmem [shape: f32[1,128], index: 6, kind: input, shape index: {}]
  %s7 = inlined_call_operand.vmem [shape: bf16[1,128], index: 7, kind: input, shape index: {}]
  %s8 = inlined_call_operand.<no memory space> [shape: f32[1,1], index: 8, kind: input, shape index: {}]
  %s9 = inlined_call_operand.hbm [shape: f32[1,2], index: 9, kind: output, shape index: {}]
  %s10 = sld [smem:[#allocation0]]
  $region62: #{tpu_custom_call.1} parent=0
    _
  %s12 = ssub.s32 1, %s10
  %s13 = scalar_select 0, %s12, %s10
  %v14 = vstv %s8
  %15 = vst [vmem:[#allocation2] sm:$0x1] %v14
  $region1: #{tpu_custom_call.1} parent=0
    #allocation3 [shape = 'u8[4096]{0}', space=vmem, size = 0x1000, scoped, tag = 'input window, operand 0, single buffered']
    #allocation4 [shape = 's32[1]{0}', space=sflag, size = 0x4, scoped, tag = 'scoped memory for tpu_custom_call.1']
    #allocation5 [shape = 's32[1]{0}', space=sflag, size = 0x4, scoped, tag = 'scoped memory for tpu_custom_call.1']
    #allocation6 [shape = 'u8[512]{0}', space=vmem, size = 0x400, scoped, tag = 'input window, operand 1, single buffered']
    #allocation7 [shape = 's32[1]{0}', space=sflag, size = 0x4, scoped, tag = 'scoped memory for tpu_custom_call.1']
    #allocation8 [shape = 'u8[262144]{0}', space=vmem, size = 0x40000, scoped, tag = 'input window, operand 2, single buffered']
    #allocation9 [shape = 'u8[32768]{0}', space=vmem, size = 0x8000, scoped, tag = 'input window, operand 5, single buffered']
    #allocation10 [shape = 's32[1]{0}', space=sflag, size = 0x4, scoped, tag = 'scoped memory for tpu_custom_call.1']
    #allocation11 [shape = 'u8[512]{0}', space=vmem, size = 0x400, scoped, tag = 'output window, operand 0, single buffered']
    %16 = vsyncpa [#allocation4], 0
    %17 = vsyncpa [#allocation7], 0
    %18 = vsyncpa [#allocation10], 0
    %19 = vsyncpa [#allocation5], 0
    // Predicated region
    $region2: #{tpu_custom_call.1} parent=1 // pred_check
      _
    $region3: #{tpu_custom_call.1} parent=1 // pred_check_branch
      %21 = sbr.rel (0) target = $region5
    $region4: #{tpu_custom_call.1} parent=1 // pred_region
      %23 = vsyncadd [#allocation4], 0
      %s25 = sshll.u32 %s0, 4
      %s26 = int_to_ptr.hbm [resolvable:$true] %s25
      %s27 = sshll.u32 [#allocation3], 4
      %s28 = int_to_ptr.vmem [resolvable:$true] %s27
      %30 = dma.hbm_to_vmem [thread:$0]  %s26, 128, %s28, [#allocation4]
    $region5: #{tpu_custom_call.1} parent=1 // pred_fallthru
      _
    // Predicated region
    $region6: #{tpu_custom_call.1} parent=1 // pred_check
      _
    $region7: #{tpu_custom_call.1} parent=1 // pred_check_branch
      %32 = sbr.rel (0) target = $region9
    $region8: #{tpu_custom_call.1} parent=1 // pred_region
      %34 = vsyncadd [#allocation7], 0
      %s36 = sshll.u32 %s1, 4
      %s37 = int_to_ptr.hbm [resolvable:$true] %s36
      %s38 = sshll.u32 [#allocation6], 4
      %s39 = int_to_ptr.vmem [resolvable:$true] %s38
      %41 = dma.hbm_to_vmem [thread:$0]  %s37, 16, %s39, [#allocation7]
    $region9: #{tpu_custom_call.1} parent=1 // pred_fallthru
      _
    // Predicated region
    $region10: #{tpu_custom_call.1} parent=1 // pred_check
      _
    $region11: #{tpu_custom_call.1} parent=1 // pred_check_branch
      %43 = sbr.rel (0) target = $region13
    $region12: #{tpu_custom_call.1} parent=1 // pred_region
      %45 = vsyncadd [#allocation7], 0
      %s46 = sshll.u32 %s2, 4
      %s47 = int_to_ptr.hbm [resolvable:$true] %s46
      %s48 = sshll.u32 [#allocation8], 4
      %s49 = int_to_ptr.vmem [resolvable:$true] %s48
      %54 = dma.hbm_to_vmem [thread:$0]  %s47, 8192, %s49, [#allocation7], 64, 64, 4
    $region13: #{tpu_custom_call.1} parent=1 // pred_fallthru
      _
    // Predicated region
    $region14: #{tpu_custom_call.1} parent=1 // pred_check
      _
    $region15: #{tpu_custom_call.1} parent=1 // pred_check_branch
      %56 = sbr.rel (0) target = $region17
    $region16: #{tpu_custom_call.1} parent=1 // pred_region
      _
    $region17: #{tpu_custom_call.1} parent=1 // pred_fallthru
      _
    // Predicated region
    $region18: #{tpu_custom_call.1} parent=1 // pred_check
      _
    $region19: #{tpu_custom_call.1} parent=1 // pred_check_branch
      %58 = sbr.rel (0) target = $region21
    $region20: #{tpu_custom_call.1} parent=1 // pred_region
      _
    $region21: #{tpu_custom_call.1} parent=1 // pred_fallthru
      _
    // Predicated region
    $region22: #{tpu_custom_call.1} parent=1 // pred_check
      _
    $region23: #{tpu_custom_call.1} parent=1 // pred_check_branch
      %60 = sbr.rel (0) target = $region25
    $region24: #{tpu_custom_call.1} parent=1 // pred_region
      %62 = vsyncadd [#allocation10], 0
      %s63 = sshll.u32 %s5, 4
      %s64 = int_to_ptr.hbm [resolvable:$true] %s63
      %s65 = sshll.u32 [#allocation9], 4
      %s66 = int_to_ptr.vmem [resolvable:$true] %s65
      %71 = dma.hbm_to_vmem [thread:$0]  %s64, 1024, %s66, [#allocation10], 64, 64, 4
    $region25: #{tpu_custom_call.1} parent=1 // pred_fallthru
      _
    // Predicated region
    $region26: #{tpu_custom_call.1} parent=1 // pred_check
      _
    $region27: #{tpu_custom_call.1} parent=1 // pred_check_branch
      %73 = sbr.rel (0) target = $region29
    $region28: #{tpu_custom_call.1} parent=1 // pred_region
      _
    $region29: #{tpu_custom_call.1} parent=1 // pred_fallthru
      _
    // Predicated region
    $region30: #{tpu_custom_call.1} parent=1 // pred_check
      _
    $region31: #{tpu_custom_call.1} parent=1 // pred_check_branch
      %75 = sbr.rel (0) target = $region33
    $region32: #{tpu_custom_call.1} parent=1 // pred_region
      _
    $region33: #{tpu_custom_call.1} parent=1 // pred_fallthru
      _
    // Predicated region
    $region34: #{tpu_custom_call.1} parent=1 // pred_check
      _
    $region35: #{tpu_custom_call.1} parent=1 // pred_check_branch
      %77 = sbr.rel (0) target = $region37
    $region36: #{tpu_custom_call.1} parent=1 // pred_region
      _
    $region37: #{tpu_custom_call.1} parent=1 // pred_fallthru
      _
    // Predicated region
    $region38: #{tpu_custom_call.1} parent=1 // pred_check
      _
    $region39: #{tpu_custom_call.1} parent=1 // pred_check_branch
      %79 = sbr.rel (0) target = $region41
    $region40: #{tpu_custom_call.1} parent=1 // pred_region
      %81 = dma.done [#allocation4], 128
    $region41: #{tpu_custom_call.1} parent=1 // pred_fallthru
      _
    // Predicated region
    $region42: #{tpu_custom_call.1} parent=1 // pred_check
      _
    $region43: #{tpu_custom_call.1} parent=1 // pred_check_branch
      %83 = sbr.rel (0) target = $region45
    $region44: #{tpu_custom_call.1} parent=1 // pred_region
      %85 = dma.done [#allocation7], 16
    $region45: #{tpu_custom_call.1} parent=1 // pred_fallthru
      _
    // Predicated region
    $region46: #{tpu_custom_call.1} parent=1 // pred_check
      _
    $region47: #{tpu_custom_call.1} parent=1 // pred_check_branch
      %87 = sbr.rel (0) target = $region49
    $region48: #{tpu_custom_call.1} parent=1 // pred_region
      %89 = dma.done [#allocation7], 8192
    $region49: #{tpu_custom_call.1} parent=1 // pred_fallthru
      _
    // Predicated region
    $region50: #{tpu_custom_call.1} parent=1 // pred_check
      _
    $region51: #{tpu_custom_call.1} parent=1 // pred_check_branch
      %91 = sbr.rel (0) target = $region53
    $region52: #{tpu_custom_call.1} parent=1 // pred_region
      %93 = dma.done [#allocation10], 1024
    $region53: #{tpu_custom_call.1} parent=1 // pred_fallthru
      _
    %v95 = vld [vmem:[#allocation3] sm:$0xff]
    %v96 = vld [vmem:[#allocation8] sm:$0xf]
    %v97 = vld [vmem:[#allocation8 + $0x4] sm:$0xf]
    %v98 = vld [vmem:[#allocation8 + $0x8] sm:$0xf]
    %v99 = vld [vmem:[#allocation8 + $0xc] sm:$0xf]
    %v100 = vld [vmem:[#allocation8 + $0x10] sm:$0xf]
    %v101 = vld [vmem:[#allocation8 + $0x14] sm:$0xf]
    %v102 = vld [vmem:[#allocation8 + $0x18] sm:$0xf]
    %v103 = vld [vmem:[#allocation8 + $0x1c] sm:$0xf]
    %v104 = vld [vmem:[#allocation8 + $0x20] sm:$0xf]
    %v105 = vld [vmem:[#allocation8 + $0x24] sm:$0xf]
    %v106 = vld [vmem:[#allocation8 + $0x28] sm:$0xf]
    %v107 = vld [vmem:[#allocation8 + $0x2c] sm:$0xf]
    %v108 = vld [vmem:[#allocation8 + $0x30] sm:$0xf]
    %v109 = vld [vmem:[#allocation8 + $0x34] sm:$0xf]
    %v110 = vld [vmem:[#allocation8 + $0x38] sm:$0xf]
    %v111 = vld [vmem:[#allocation8 + $0x3c] sm:$0xf]
    %v112 = vld [vmem:[#allocation8 + $0x40] sm:$0xf]
    %v113 = vld [vmem:[#allocation8 + $0x44] sm:$0xf]
    %v114 = vld [vmem:[#allocation8 + $0x48] sm:$0xf]
    %v115 = vld [vmem:[#allocation8 + $0x4c] sm:$0xf]
    %v116 = vld [vmem:[#allocation8 + $0x50] sm:$0xf]
    %v117 = vld [vmem:[#allocation8 + $0x54] sm:$0xf]
    %v118 = vld [vmem:[#allocation8 + $0x58] sm:$0xf]
    %v119 = vld [vmem:[#allocation8 + $0x5c] sm:$0xf]
    %v120 = vld [vmem:[#allocation8 + $0x60] sm:$0xf]
    %v121 = vld [vmem:[#allocation8 + $0x64] sm:$0xf]
    %v122 = vld [vmem:[#allocation8 + $0x68] sm:$0xf]
    %v123 = vld [vmem:[#allocation8 + $0x6c] sm:$0xf]
    %v124 = vld [vmem:[#allocation8 + $0x70] sm:$0xf]
    %v125 = vld [vmem:[#allocation8 + $0x74] sm:$0xf]
    %v126 = vld [vmem:[#allocation8 + $0x78] sm:$0xf]
    %v127 = vld [vmem:[#allocation8 + $0x7c] sm:$0xf]
    %v128 = vld [vmem:[#allocation8 + $0x80] sm:$0xf]
    %v129 = vld [vmem:[#allocation8 + $0x84] sm:$0xf]
    %v130 = vld [vmem:[#allocation8 + $0x88] sm:$0xf]
    %v131 = vld [vmem:[#allocation8 + $0x8c] sm:$0xf]
    %v132 = vld [vmem:[#allocation8 + $0x90] sm:$0xf]
    %v133 = vld [vmem:[#allocation8 + $0x94] sm:$0xf]
    %v134 = vld [vmem:[#allocation8 + $0x98] sm:$0xf]
    %v135 = vld [vmem:[#allocation8 + $0x9c] sm:$0xf]
    %v136 = vld [vmem:[#allocation8 + $0xa0] sm:$0xf]
    %v137 = vld [vmem:[#allocation8 + $0xa4] sm:$0xf]
    %v138 = vld [vmem:[#allocation8 + $0xa8] sm:$0xf]
    %v139 = vld [vmem:[#allocation8 + $0xac] sm:$0xf]
    %v140 = vld [vmem:[#allocation8 + $0xb0] sm:$0xf]
    %v141 = vld [vmem:[#allocation8 + $0xb4] sm:$0xf]
    %v142 = vld [vmem:[#allocation8 + $0xb8] sm:$0xf]
    %v143 = vld [vmem:[#allocation8 + $0xbc] sm:$0xf]
    %v144 = vld [vmem:[#allocation8 + $0xc0] sm:$0xf]
    %v145 = vld [vmem:[#allocation8 + $0xc4] sm:$0xf]
    %v146 = vld [vmem:[#allocation8 + $0xc8] sm:$0xf]
    %v147 = vld [vmem:[#allocation8 + $0xcc] sm:$0xf]
    %v148 = vld [vmem:[#allocation8 + $0xd0] sm:$0xf]
    %v149 = vld [vmem:[#allocation8 + $0xd4] sm:$0xf]
    %v150 = vld [vmem:[#allocation8 + $0xd8] sm:$0xf]
    %v151 = vld [vmem:[#allocation8 + $0xdc] sm:$0xf]
    %v152 = vld [vmem:[#allocation8 + $0xe0] sm:$0xf]
    %v153 = vld [vmem:[#allocation8 + $0xe4] sm:$0xf]
    %v154 = vld [vmem:[#allocation8 + $0xe8] sm:$0xf]
    %v155 = vld [vmem:[#allocation8 + $0xec] sm:$0xf]
    %v156 = vld [vmem:[#allocation8 + $0xf0] sm:$0xf]
    %v157 = vld [vmem:[#allocation8 + $0xf4] sm:$0xf]
    %v158 = vld [vmem:[#allocation8 + $0xf8] sm:$0xf]
    %v159 = vld [vmem:[#allocation8 + $0xfc] sm:$0xf]
    %v160 = vld [vmem:[#allocation8 + $0x100] sm:$0xf]
    %v161 = vld [vmem:[#allocation8 + $0x104] sm:$0xf]
    %v162 = vld [vmem:[#allocation8 + $0x108] sm:$0xf]
    %v163 = vld [vmem:[#allocation8 + $0x10c] sm:$0xf]
    %v164 = vld [vmem:[#allocation8 + $0x110] sm:$0xf]
    %v165 = vld [vmem:[#allocation8 + $0x114] sm:$0xf]
    %v166 = vld [vmem:[#allocation8 + $0x118] sm:$0xf]
    %v167 = vld [vmem:[#allocation8 + $0x11c] sm:$0xf]
    %v168 = vld [vmem:[#allocation8 + $0x120] sm:$0xf]
    %v169 = vld [vmem:[#allocation8 + $0x124] sm:$0xf]
    %v170 = vld [vmem:[#allocation8 + $0x128] sm:$0xf]
    %v171 = vld [vmem:[#allocation8 + $0x12c] sm:$0xf]
    %v172 = vld [vmem:[#allocation8 + $0x130] sm:$0xf]
    %v173 = vld [vmem:[#allocation8 + $0x134] sm:$0xf]
    %v174 = vld [vmem:[#allocation8 + $0x138] sm:$0xf]
    %v175 = vld [vmem:[#allocation8 + $0x13c] sm:$0xf]
    %v176 = vld [vmem:[#allocation8 + $0x140] sm:$0xf]
    %v177 = vld [vmem:[#allocation8 + $0x144] sm:$0xf]
    %v178 = vld [vmem:[#allocation8 + $0x148] sm:$0xf]
    %v179 = vld [vmem:[#allocation8 + $0x14c] sm:$0xf]
    %v180 = vld [vmem:[#allocation8 + $0x150] sm:$0xf]
    %v181 = vld [vmem:[#allocation8 + $0x154] sm:$0xf]
    %v182 = vld [vmem:[#allocation8 + $0x158] sm:$0xf]
    %v183 = vld [vmem:[#allocation8 + $0x15c] sm:$0xf]
    %v184 = vld [vmem:[#allocation8 + $0x160] sm:$0xf]
    %v185 = vld [vmem:[#allocation8 + $0x164] sm:$0xf]
    %v186 = vld [vmem:[#allocation8 + $0x168] sm:$0xf]
    %v187 = vld [vmem:[#allocation8 + $0x16c] sm:$0xf]
    %v188 = vld [vmem:[#allocation8 + $0x170] sm:$0xf]
    %v189 = vld [vmem:[#allocation8 + $0x174] sm:$0xf]
    %v190 = vld [vmem:[#allocation8 + $0x178] sm:$0xf]
    %v191 = vld [vmem:[#allocation8 + $0x17c] sm:$0xf]
    %v192 = vld [vmem:[#allocation8 + $0x180] sm:$0xf]
    %v193 = vld [vmem:[#allocation8 + $0x184] sm:$0xf]
    %v194 = vld [vmem:[#allocation8 + $0x188] sm:$0xf]
    %v195 = vld [vmem:[#allocation8 + $0x18c] sm:$0xf]
    %v196 = vld [vmem:[#allocation8 + $0x190] sm:$0xf]
    %v197 = vld [vmem:[#allocation8 + $0x194] sm:$0xf]
    %v198 = vld [vmem:[#allocation8 + $0x198] sm:$0xf]
    %v199 = vld [vmem:[#allocation8 + $0x19c] sm:$0xf]
    %v200 = vld [vmem:[#allocation8 + $0x1a0] sm:$0xf]
    %v201 = vld [vmem:[#allocation8 + $0x1a4] sm:$0xf]
    %v202 = vld [vmem:[#allocation8 + $0x1a8] sm:$0xf]
    %v203 = vld [vmem:[#allocation8 + $0x1ac] sm:$0xf]
    %v204 = vld [vmem:[#allocation8 + $0x1b0] sm:$0xf]
    %v205 = vld [vmem:[#allocation8 + $0x1b4] sm:$0xf]
    %v206 = vld [vmem:[#allocation8 + $0x1b8] sm:$0xf]
    %v207 = vld [vmem:[#allocation8 + $0x1bc] sm:$0xf]
    %v208 = vld [vmem:[#allocation8 + $0x1c0] sm:$0xf]
    %v209 = vld [vmem:[#allocation8 + $0x1c4] sm:$0xf]
    %v210 = vld [vmem:[#allocation8 + $0x1c8] sm:$0xf]
    %v211 = vld [vmem:[#allocation8 + $0x1cc] sm:$0xf]
    %v212 = vld [vmem:[#allocation8 + $0x1d0] sm:$0xf]
    %v213 = vld [vmem:[#allocation8 + $0x1d4] sm:$0xf]
    %v214 = vld [vmem:[#allocation8 + $0x1d8] sm:$0xf]
    %v215 = vld [vmem:[#allocation8 + $0x1dc] sm:$0xf]
    %v216 = vld [vmem:[#allocation8 + $0x1e0] sm:$0xf]
    %v217 = vld [vmem:[#allocation8 + $0x1e4] sm:$0xf]
    %v218 = vld [vmem:[#allocation8 + $0x1e8] sm:$0xf]
    %v219 = vld [vmem:[#allocation8 + $0x1ec] sm:$0xf]
    %v220 = vld [vmem:[#allocation8 + $0x1f0] sm:$0xf]
    %v221 = vld [vmem:[#allocation8 + $0x1f4] sm:$0xf]
    %v222 = vld [vmem:[#allocation8 + $0x1f8] sm:$0xf]
    %v223 = vld [vmem:[#allocation8 + $0x1fc] sm:$0xf]
    %v224 = vld [vmem:[#allocation6] sm:$0x1]
    %v225 = vld [vmem:[%s3] sm:$0xf]
    %vm226 = vcmask 64512
    %v228 = vsel %vm226, %v224, 0
    %vm230 = vcmask 1043456
    %v232 = vsel %vm230, %v225, 0
    %234 = vmatpush.bf16.msra.mxu0 0
    %235 = vmatpush.bf16.msra.mxu0 0
    %236 = vmatpush.bf16.msra.mxu0 0
    %237 = vmatpush.bf16.msra.mxu0 0
    %238 = vmatpush.bf16.msra.mxu0 0
    %239 = vmatpush.bf16.msra.mxu0 0
    %240 = vmatpush.bf16.msra.mxu0 0
    %241 = vmatpush.bf16.msra.mxu0 %v232
    %242 = vmatmul.bf16.gmra.mxu0 %v228
    %v243 = vpop.f32.mrf.mxu0
    %v244 = vadd.f32 0.0, %v243
    %v245 = vpop.f32.mrf.mxu0
    %246 = vdwg.mxu0
    %248 = vst [vmem:[#allocation1] ss:$9 sm:$0xff] %v95
    %v249 = vld [vmem:[#allocation1] sm:$0xff]
    %v250 = vld [vmem:[#allocation1 + $0x9] sm:$0xff]
    %v251 = vld [vmem:[#allocation1 + $0x12] sm:$0xff]
    %v252 = vld [vmem:[#allocation1 + $0x1b] sm:$0xff]
    %v253 = vld [vmem:[#allocation1 + $0x24] sm:$0xff]
    %v254 = vld [vmem:[#allocation1 + $0x2d] sm:$0xff]
    %v255 = vld [vmem:[#allocation1 + $0x36] sm:$0xff]
    %v256 = vld [vmem:[#allocation1 + $0x3f] sm:$0xff]
    %v393 = vunpack.c.l.b16 %v96
    %v394 = vunpack.c.l.b16 %v97
    %v395 = vunpack.c.l.b16 %v98
    %v396 = vunpack.c.l.b16 %v99
    %v397 = vunpack.c.l.b16 %v100
    %v398 = vunpack.c.l.b16 %v101
    %v399 = vunpack.c.l.b16 %v102
    %v400 = vunpack.c.l.b16 %v103
    %v401 = vunpack.c.l.b16 %v104
    %v402 = vunpack.c.l.b16 %v105
    %v403 = vunpack.c.l.b16 %v106
    %v404 = vunpack.c.l.b16 %v107
    %v405 = vunpack.c.l.b16 %v108
    %v406 = vunpack.c.l.b16 %v109
    %v407 = vunpack.c.l.b16 %v110
    %v408 = vunpack.c.l.b16 %v111
    %v409 = vunpack.c.l.b16 %v112
    %v410 = vunpack.c.l.b16 %v113
    %v411 = vunpack.c.l.b16 %v114
    %v412 = vunpack.c.l.b16 %v115
    %v413 = vunpack.c.l.b16 %v116
    %v414 = vunpack.c.l.b16 %v117
    %v415 = vunpack.c.l.b16 %v118
    %v416 = vunpack.c.l.b16 %v119
    %v417 = vunpack.c.l.b16 %v120
    %v418 = vunpack.c.l.b16 %v121
    %v419 = vunpack.c.l.b16 %v122
    %v420 = vunpack.c.l.b16 %v123
    %v421 = vunpack.c.l.b16 %v124
    %v422 = vunpack.c.l.b16 %v125
    %v423 = vunpack.c.l.b16 %v126
    %v424 = vunpack.c.l.b16 %v127
    %v425 = vunpack.c.l.b16 %v128
    %v426 = vunpack.c.l.b16 %v129
    %v427 = vunpack.c.l.b16 %v130
    %v428 = vunpack.c.l.b16 %v131
    %v429 = vunpack.c.l.b16 %v132
    %v430 = vunpack.c.l.b16 %v133
    %v431 = vunpack.c.l.b16 %v134
    %v432 = vunpack.c.l.b16 %v135
    %v433 = vunpack.c.l.b16 %v136
    %v434 = vunpack.c.l.b16 %v137
    %v435 = vunpack.c.l.b16 %v138
    %v436 = vunpack.c.l.b16 %v139
    %v437 = vunpack.c.l.b16 %v140
    %v438 = vunpack.c.l.b16 %v141
    %v439 = vunpack.c.l.b16 %v142
    %v440 = vunpack.c.l.b16 %v143
    %v441 = vunpack.c.l.b16 %v144
    %v442 = vunpack.c.l.b16 %v145
    %v443 = vunpack.c.l.b16 %v146
    %v444 = vunpack.c.l.b16 %v147
    %v445 = vunpack.c.l.b16 %v148
    %v446 = vunpack.c.l.b16 %v149
    %v447 = vunpack.c.l.b16 %v150
    %v448 = vunpack.c.l.b16 %v151
    %v449 = vunpack.c.l.b16 %v152
    %v450 = vunpack.c.l.b16 %v153
    %v451 = vunpack.c.l.b16 %v154
    %v452 = vunpack.c.l.b16 %v155
    %v453 = vunpack.c.l.b16 %v156
    %v454 = vunpack.c.l.b16 %v157
    %v455 = vunpack.c.l.b16 %v158
    %v456 = vunpack.c.l.b16 %v159
    %v457 = vunpack.c.l.b16 %v160
    %v458 = vunpack.c.l.b16 %v161
    %v459 = vunpack.c.l.b16 %v162
    %v460 = vunpack.c.l.b16 %v163
    %v461 = vunpack.c.l.b16 %v164
    %v462 = vunpack.c.l.b16 %v165
    %v463 = vunpack.c.l.b16 %v166
    %v464 = vunpack.c.l.b16 %v167
    %v465 = vunpack.c.l.b16 %v168
    %v466 = vunpack.c.l.b16 %v169
    %v467 = vunpack.c.l.b16 %v170
    %v468 = vunpack.c.l.b16 %v171
    %v469 = vunpack.c.l.b16 %v172
    %v470 = vunpack.c.l.b16 %v173
    %v471 = vunpack.c.l.b16 %v174
    %v472 = vunpack.c.l.b16 %v175
    %v473 = vunpack.c.l.b16 %v176
    %v474 = vunpack.c.l.b16 %v177
    %v475 = vunpack.c.l.b16 %v178
    %v476 = vunpack.c.l.b16 %v179
    %v477 = vunpack.c.l.b16 %v180
    %v478 = vunpack.c.l.b16 %v181
    %v479 = vunpack.c.l.b16 %v182
    %v480 = vunpack.c.l.b16 %v183
    %v481 = vunpack.c.l.b16 %v184
    %v482 = vunpack.c.l.b16 %v185
    %v483 = vunpack.c.l.b16 %v186
    %v484 = vunpack.c.l.b16 %v187
    %v485 = vunpack.c.l.b16 %v188
    %v486 = vunpack.c.l.b16 %v189
    %v487 = vunpack.c.l.b16 %v190
    %v488 = vunpack.c.l.b16 %v191
    %v489 = vunpack.c.l.b16 %v192
    %v490 = vunpack.c.l.b16 %v193
    %v491 = vunpack.c.l.b16 %v194
    %v492 = vunpack.c.l.b16 %v195
    %v493 = vunpack.c.l.b16 %v196
    %v494 = vunpack.c.l.b16 %v197
    %v495 = vunpack.c.l.b16 %v198
    %v496 = vunpack.c.l.b16 %v199
    %v497 = vunpack.c.l.b16 %v200
    %v498 = vunpack.c.l.b16 %v201
    %v499 = vunpack.c.l.b16 %v202
    %v500 = vunpack.c.l.b16 %v203
    %v501 = vunpack.c.l.b16 %v204
    %v502 = vunpack.c.l.b16 %v205
    %v503 = vunpack.c.l.b16 %v206
    %v504 = vunpack.c.l.b16 %v207
    %v505 = vunpack.c.l.b16 %v208
    %v506 = vunpack.c.l.b16 %v209
    %v507 = vunpack.c.l.b16 %v210
    %v508 = vunpack.c.l.b16 %v211
    %v509 = vunpack.c.l.b16 %v212
    %v510 = vunpack.c.l.b16 %v213
    %v511 = vunpack.c.l.b16 %v214
    %v512 = vunpack.c.l.b16 %v215
    %v513 = vunpack.c.l.b16 %v216
    %v514 = vunpack.c.l.b16 %v217
    %v515 = vunpack.c.l.b16 %v218
    %v516 = vunpack.c.l.b16 %v219
    %v517 = vunpack.c.l.b16 %v220
    %v518 = vunpack.c.l.b16 %v221
    %v519 = vunpack.c.l.b16 %v222
    %v520 = vunpack.c.l.b16 %v223
    %v521 = vpack.c.b16 %v394, %v393
    %v522 = vpack.c.b16 %v396, %v395
    %v523 = vpack.c.b16 %v398, %v397
    %v524 = vpack.c.b16 %v400, %v399
    %v525 = vpack.c.b16 %v402, %v401
    %v526 = vpack.c.b16 %v404, %v403
    %v527 = vpack.c.b16 %v406, %v405
    %v528 = vpack.c.b16 %v408, %v407
    %v529 = vpack.c.b16 %v410, %v409
    %v530 = vpack.c.b16 %v412, %v411
    %v531 = vpack.c.b16 %v414, %v413
    %v532 = vpack.c.b16 %v416, %v415
    %v533 = vpack.c.b16 %v418, %v417
    %v534 = vpack.c.b16 %v420, %v419
    %v535 = vpack.c.b16 %v422, %v421
    %v536 = vpack.c.b16 %v424, %v423
    %v537 = vpack.c.b16 %v426, %v425
    %v538 = vpack.c.b16 %v428, %v427
    %v539 = vpack.c.b16 %v430, %v429
    %v540 = vpack.c.b16 %v432, %v431
    %v541 = vpack.c.b16 %v434, %v433
    %v542 = vpack.c.b16 %v436, %v435
    %v543 = vpack.c.b16 %v438, %v437
    %v544 = vpack.c.b16 %v440, %v439
    %v545 = vpack.c.b16 %v442, %v441
    %v546 = vpack.c.b16 %v444, %v443
    %v547 = vpack.c.b16 %v446, %v445
    %v548 = vpack.c.b16 %v448, %v447
    %v549 = vpack.c.b16 %v450, %v449
    %v550 = vpack.c.b16 %v452, %v451
    %v551 = vpack.c.b16 %v454, %v453
    %v552 = vpack.c.b16 %v456, %v455
    %v553 = vpack.c.b16 %v458, %v457
    %v554 = vpack.c.b16 %v460, %v459
    %v555 = vpack.c.b16 %v462, %v461
    %v556 = vpack.c.b16 %v464, %v463
    %v557 = vpack.c.b16 %v466, %v465
    %v558 = vpack.c.b16 %v468, %v467
    %v559 = vpack.c.b16 %v470, %v469
    %v560 = vpack.c.b16 %v472, %v471
    %v561 = vpack.c.b16 %v474, %v473
    %v562 = vpack.c.b16 %v476, %v475
    %v563 = vpack.c.b16 %v478, %v477
    %v564 = vpack.c.b16 %v480, %v479
    %v565 = vpack.c.b16 %v482, %v481
    %v566 = vpack.c.b16 %v484, %v483
    %v567 = vpack.c.b16 %v486, %v485
    %v568 = vpack.c.b16 %v488, %v487
    %v569 = vpack.c.b16 %v490, %v489
    %v570 = vpack.c.b16 %v492, %v491
    %v571 = vpack.c.b16 %v494, %v493
    %v572 = vpack.c.b16 %v496, %v495
    %v573 = vpack.c.b16 %v498, %v497
    %v574 = vpack.c.b16 %v500, %v499
    %v575 = vpack.c.b16 %v502, %v501
    %v576 = vpack.c.b16 %v504, %v503
    %v577 = vpack.c.b16 %v506, %v505
    %v578 = vpack.c.b16 %v508, %v507
    %v579 = vpack.c.b16 %v510, %v509
    %v580 = vpack.c.b16 %v512, %v511
    %v581 = vpack.c.b16 %v514, %v513
    %v582 = vpack.c.b16 %v516, %v515
    %v583 = vpack.c.b16 %v518, %v517
    %v584 = vpack.c.b16 %v520, %v519
    %649 = vmatpush.bf16.msra.mxu0 %v528
    %650 = vmatpush.bf16.msra.mxu0 %v527
    %651 = vmatpush.bf16.msra.mxu0 %v526
    %652 = vmatpush.bf16.msra.mxu0 %v525
    %653 = vmatpush.bf16.msra.mxu0 %v524
    %654 = vmatpush.bf16.msra.mxu0 %v523
    %655 = vmatpush.bf16.msra.mxu0 %v522
    %656 = vmatpush.bf16.msra.mxu0 %v521
    %657 = vmatmul.bf16.gmra.mxu0 %v249
    %v658 = vpop.f32.mrf.mxu0
    %v659 = vadd.f32 %v244, %v658
    %v660 = vpop.f32.mrf.mxu0
    %661 = vdwg.mxu0
    %662 = vmatpush.bf16.msra.mxu0 %v536
    %663 = vmatpush.bf16.msra.mxu0 %v535
    %664 = vmatpush.bf16.msra.mxu0 %v534
    %665 = vmatpush.bf16.msra.mxu0 %v533
    %666 = vmatpush.bf16.msra.mxu0 %v532
    %667 = vmatpush.bf16.msra.mxu0 %v531
    %668 = vmatpush.bf16.msra.mxu0 %v530
    %669 = vmatpush.bf16.msra.mxu0 %v529
    %670 = vmatmul.bf16.gmra.mxu0 %v250
    %v671 = vpop.f32.mrf.mxu0
    %v672 = vadd.f32 %v659, %v671
    %v673 = vpop.f32.mrf.mxu0
    %674 = vdwg.mxu0
    %675 = vmatpush.bf16.msra.mxu0 %v544
    %676 = vmatpush.bf16.msra.mxu0 %v543
    %677 = vmatpush.bf16.msra.mxu0 %v542
    %678 = vmatpush.bf16.msra.mxu0 %v541
    %679 = vmatpush.bf16.msra.mxu0 %v540
    %680 = vmatpush.bf16.msra.mxu0 %v539
    %681 = vmatpush.bf16.msra.mxu0 %v538
    %682 = vmatpush.bf16.msra.mxu0 %v537
    %683 = vmatmul.bf16.gmra.mxu0 %v251
    %v684 = vpop.f32.mrf.mxu0
    %v685 = vadd.f32 %v672, %v684
    %v686 = vpop.f32.mrf.mxu0
    %687 = vdwg.mxu0
    %688 = vmatpush.bf16.msra.mxu0 %v552
    %689 = vmatpush.bf16.msra.mxu0 %v551
    %690 = vmatpush.bf16.msra.mxu0 %v550
    %691 = vmatpush.bf16.msra.mxu0 %v549
    %692 = vmatpush.bf16.msra.mxu0 %v548
    %693 = vmatpush.bf16.msra.mxu0 %v547
    %694 = vmatpush.bf16.msra.mxu0 %v546
    %695 = vmatpush.bf16.msra.mxu0 %v545
    %696 = vmatmul.bf16.gmra.mxu0 %v252
    %v697 = vpop.f32.mrf.mxu0
    %v698 = vadd.f32 %v685, %v697
    %v699 = vpop.f32.mrf.mxu0
    %700 = vdwg.mxu0
    %701 = vmatpush.bf16.msra.mxu0 %v560
    %702 = vmatpush.bf16.msra.mxu0 %v559
    %703 = vmatpush.bf16.msra.mxu0 %v558
    %704 = vmatpush.bf16.msra.mxu0 %v557
    %705 = vmatpush.bf16.msra.mxu0 %v556
    %706 = vmatpush.bf16.msra.mxu0 %v555
    %707 = vmatpush.bf16.msra.mxu0 %v554
    %708 = vmatpush.bf16.msra.mxu0 %v553
    %709 = vmatmul.bf16.gmra.mxu0 %v253
    %v710 = vpop.f32.mrf.mxu0
    %v711 = vadd.f32 %v698, %v710
    %v712 = vpop.f32.mrf.mxu0
    %713 = vdwg.mxu0
    %714 = vmatpush.bf16.msra.mxu0 %v568
    %715 = vmatpush.bf16.msra.mxu0 %v567
    %716 = vmatpush.bf16.msra.mxu0 %v566
    %717 = vmatpush.bf16.msra.mxu0 %v565
    %718 = vmatpush.bf16.msra.mxu0 %v564
    %719 = vmatpush.bf16.msra.mxu0 %v563
    %720 = vmatpush.bf16.msra.mxu0 %v562
    %721 = vmatpush.bf16.msra.mxu0 %v561
    %722 = vmatmul.bf16.gmra.mxu0 %v254
    %v723 = vpop.f32.mrf.mxu0
    %v724 = vadd.f32 %v711, %v723
    %v725 = vpop.f32.mrf.mxu0
    %726 = vdwg.mxu0
    %727 = vmatpush.bf16.msra.mxu0 %v576
    %728 = vmatpush.bf16.msra.mxu0 %v575
    %729 = vmatpush.bf16.msra.mxu0 %v574
    %730 = vmatpush.bf16.msra.mxu0 %v573
    %731 = vmatpush.bf16.msra.mxu0 %v572
    %732 = vmatpush.bf16.msra.mxu0 %v571
    %733 = vmatpush.bf16.msra.mxu0 %v570
    %734 = vmatpush.bf16.msra.mxu0 %v569
    %735 = vmatmul.bf16.gmra.mxu0 %v255
    %v736 = vpop.f32.mrf.mxu0
    %v737 = vadd.f32 %v724, %v736
    %v738 = vpop.f32.mrf.mxu0
    %739 = vdwg.mxu0
    %740 = vmatpush.bf16.msra.mxu0 %v584
    %741 = vmatpush.bf16.msra.mxu0 %v583
    %742 = vmatpush.bf16.msra.mxu0 %v582
    %743 = vmatpush.bf16.msra.mxu0 %v581
    %744 = vmatpush.bf16.msra.mxu0 %v580
    %745 = vmatpush.bf16.msra.mxu0 %v579
    %746 = vmatpush.bf16.msra.mxu0 %v578
    %747 = vmatpush.bf16.msra.mxu0 %v577
    %748 = vmatmul.bf16.gmra.mxu0 %v256
    %v749 = vpop.f32.mrf.mxu0
    %v750 = vadd.f32 %v737, %v749
    %v751 = vpop.f32.mrf.mxu0
    %752 = vdwg.mxu0
    %v753 = vld [vmem:[%s4] sm:$0x1]
    %v755 = vperm.slane %v753, 0
    %v757 = vadd.f32 %v750, %v755
    %v758 = vmax.f32 %v757, 0.0
    %v759 = vpack.c.bf16 %v758, %v758
    %v760 = vld [vmem:[#allocation9] sm:$0xf]
    %v761 = vld [vmem:[#allocation9 + $0x4] sm:$0xf]
    %v762 = vld [vmem:[#allocation9 + $0x8] sm:$0xf]
    %v763 = vld [vmem:[#allocation9 + $0xc] sm:$0xf]
    %v764 = vld [vmem:[#allocation9 + $0x10] sm:$0xf]
    %v765 = vld [vmem:[#allocation9 + $0x14] sm:$0xf]
    %v766 = vld [vmem:[#allocation9 + $0x18] sm:$0xf]
    %v767 = vld [vmem:[#allocation9 + $0x1c] sm:$0xf]
    %v768 = vld [vmem:[#allocation9 + $0x20] sm:$0xf]
    %v769 = vld [vmem:[#allocation9 + $0x24] sm:$0xf]
    %v770 = vld [vmem:[#allocation9 + $0x28] sm:$0xf]
    %v771 = vld [vmem:[#allocation9 + $0x2c] sm:$0xf]
    %v772 = vld [vmem:[#allocation9 + $0x30] sm:$0xf]
    %v773 = vld [vmem:[#allocation9 + $0x34] sm:$0xf]
    %v774 = vld [vmem:[#allocation9 + $0x38] sm:$0xf]
    %v775 = vld [vmem:[#allocation9 + $0x3c] sm:$0xf]
    %v776 = vld [vmem:[%s6] sm:$0x1]
    %v778 = vperm.slane %v776, 0
    %v796 = vunpack.c.l.b16 %v760
    %v797 = vunpack.c.l.b16 %v761
    %v798 = vunpack.c.l.b16 %v762
    %v799 = vunpack.c.l.b16 %v763
    %v800 = vunpack.c.l.b16 %v764
    %v801 = vunpack.c.l.b16 %v765
    %v802 = vunpack.c.l.b16 %v766
    %v803 = vunpack.c.l.b16 %v767
    %v804 = vunpack.c.l.b16 %v768
    %v805 = vunpack.c.l.b16 %v769
    %v806 = vunpack.c.l.b16 %v770
    %v807 = vunpack.c.l.b16 %v771
    %v808 = vunpack.c.l.b16 %v772
    %v809 = vunpack.c.l.b16 %v773
    %v810 = vunpack.c.l.b16 %v774
    %v811 = vunpack.c.l.b16 %v775
    %v812 = vpack.c.b16 %v797, %v796
    %v813 = vpack.c.b16 %v799, %v798
    %v814 = vpack.c.b16 %v801, %v800
    %v815 = vpack.c.b16 %v803, %v802
    %v816 = vpack.c.b16 %v805, %v804
    %v817 = vpack.c.b16 %v807, %v806
    %v818 = vpack.c.b16 %v809, %v808
    %v819 = vpack.c.b16 %v811, %v810
    %828 = vmatpush.bf16.msra.mxu0 %v819
    %829 = vmatpush.bf16.msra.mxu0 %v818
    %830 = vmatpush.bf16.msra.mxu0 %v817
    %831 = vmatpush.bf16.msra.mxu0 %v816
    %832 = vmatpush.bf16.msra.mxu0 %v815
    %833 = vmatpush.bf16.msra.mxu0 %v814
    %834 = vmatpush.bf16.msra.mxu0 %v813
    %835 = vmatpush.bf16.msra.mxu0 %v812
    %836 = vmatmul.bf16.gmra.mxu0 %v759
    %v837 = vpop.f32.mrf.mxu0
    %v838 = vadd.f32 %v778, %v837
    %v839 = vpop.f32.mrf.mxu0
    %840 = vdwg.mxu0
    %v841 = vmax.f32 %v838, 0.0
    %v842 = vld [vmem:[%s7] sm:$0x1]
    %v843 = vpack.c.bf16 %v841, %v841
    %v844 = vld [vmem:[#allocation2] sm:$0x1]
    %846 = vset.pattern.permute.xlu0 0
    %847 = vperm.xlu0 %846, %v844
    %v848 = vpop.permute.xlu0 %847
    %v850 = vperm.slane %v848, 0
    %851 = vmatpush.bf16.xpose.msra.mxu0 0
    %852 = vmatpush.bf16.xpose.msra.mxu0 0
    %853 = vmatpush.bf16.xpose.msra.mxu0 0
    %854 = vmatpush.bf16.xpose.msra.mxu0 0
    %855 = vmatpush.bf16.xpose.msra.mxu0 0
    %856 = vmatpush.bf16.xpose.msra.mxu0 0
    %857 = vmatpush.bf16.xpose.msra.mxu0 0
    %858 = vmatpush.bf16.xpose.msra.mxu0 %v843
    %859 = vmatmul.bf16.gmra.mxu0 %v842
    %v860 = vpop.f32.mrf.mxu0
    %v861 = vadd.f32 %v850, %v860
    %v862 = vpop.f32.mrf.mxu0
    %863 = vdwg.mxu0
    %vm864 = vcmask 8192
    %865 = vst.msk [vmem:[#allocation11] sm:$0x1] %vm864, %v861
    // Predicated region
    $region54: #{tpu_custom_call.1} parent=1 // pred_check
      _
    $region55: #{tpu_custom_call.1} parent=1 // pred_check_branch
      %867 = sbr.rel (0) target = $region57
    $region56: #{tpu_custom_call.1} parent=1 // pred_region
      %869 = vsyncadd [#allocation5], 0
      %s871 = sshll.u32 [#allocation11], 4
      %s872 = int_to_ptr.vmem [resolvable:$true] %s871
      %s873 = sshll.u32 %s9, 4
      %s874 = int_to_ptr.hbm [resolvable:$true] %s873
      %876 = dma.vmem_to_hbm [thread:$0]  %s872, 16, %s874, [#allocation5]
    $region57: #{tpu_custom_call.1} parent=1 // pred_fallthru
      _
    // Predicated region
    $region58: #{tpu_custom_call.1} parent=1 // pred_check
      _
    $region59: #{tpu_custom_call.1} parent=1 // pred_check_branch
      %878 = sbr.rel (0) target = $region61
    $region60: #{tpu_custom_call.1} parent=1 // pred_region
      %880 = dma.done [#allocation5], 16
    $region61: #{tpu_custom_call.1} parent=1 // pred_fallthru
      _
    %881 = vsyncpa [#allocation4], 1
    %882 = vsyncpa [#allocation7], 1
    %883 = vsyncpa [#allocation10], 1
    %884 = vsyncpa [#allocation5], 1

</llo_original>
